<compile_context>
chip_gen: v5e
topology: v5e:2x2
jax: 0.10.0
libtpu: 0.0.40
codegen_flags: <defaults>
</compile_context>

<pallas_src>
import jax
import jax.numpy as jnp
from jax.experimental import pallas as pl
from jax.experimental.pallas import tpu as pltpu


def _proto_dist_kernel(feat_ref, proto_ref, p2_ref, out_ref):
    # feat_ref : (C, TM)   tile of pixel columns (channels on sublanes, pixels on lanes)
    # proto_ref: (K, C)    all prototypes (same resident block every grid step)
    # p2_ref   : (K, 1)    precomputed ||p_k||^2
    # out_ref  : (K, TM)   lane-dense L2 distances
    f = feat_ref[...].astype(jnp.float32)                       # (C, TM)
    p = proto_ref[...].astype(jnp.float32)                      # (K, C)
    cross = jnp.dot(p, f, preferred_element_type=jnp.float32)   # (K, TM)  MXU
    f2 = jnp.sum(f * f, axis=0, keepdims=True)                  # (1, TM)
    d2 = p2_ref[...] + f2 - 2.0 * cross                         # (K, TM)
    out_ref[...] = jnp.sqrt(jnp.maximum(d2, 0.0)).astype(out_ref.dtype)


def feat_prototype_distance(feat, objective_vectors, class_numbers, *,
                            tile_m=1024, vmem_limit_bytes=None):
    """feat: (N, C, H, W); objective_vectors: (1, class_numbers, C).
    Returns (N, class_numbers, H, W) float32."""
    N, C, H, W = feat.shape
    K = class_numbers
    HW = H * W

    # Free reshape of contiguous NCHW -> (N, C, HW): no relayout, no transpose.
    # Keep feat in its native dtype (e.g. bf16) so the dominant HBM stream stays narrow.
    feat_p = feat.reshape(N, C, HW)

    # Prototypes as (K, C) -- a plain slice, no transpose. Precompute ||p||^2 once.
    proto = objective_vectors[0, :K, :]
    p2 = jnp.sum(proto.astype(jnp.float32) ** 2, axis=1, keepdims=True)  # (K, 1)

    # Pick a lane-dense pixel tile: multiple of 128, at most the (padded) pixel count,
    # capped so double-buffered (input + output) tiles fit a conservative VMEM budget
    # (safe for v5e's 16 MiB scoped default and v7x's 64 MiB VMEM).
    tm = min(tile_m, pl.cdiv(HW, 128) * 128)
    tm = max(128, (tm // 128) * 128)
    bytes_per_pixel_col = 4 * (C + K)                 # f32 compute-width per pixel column
    vmem_budget = 8 * 1024 * 1024
    max_tm = max(128, (vmem_budget // (2 * bytes_per_pixel_col)) // 128 * 128)
    tm = min(tm, max_tm)

    # Ragged pixel tail: pad up to a tile multiple (only materializes if needed).
    HW_pad = pl.cdiv(HW, tm) * tm
    if HW_pad != HW:
        feat_p = jnp.pad(feat_p, ((0, 0), (0, 0), (0, HW_pad - HW)))

    grid = (N, HW_pad // tm)

    out_full = pl.pallas_call(
        _proto_dist_kernel,
        out_shape=jax.ShapeDtypeStruct((N, K, HW_pad), jnp.float32),
        grid_spec=pltpu.PrefetchScalarGridSpec(
            num_scalar_prefetch=0,
            grid=grid,
            in_specs=[
                # (C, tm) pixel-column tile of image n
                pl.BlockSpec((pl.Squeezed(), C, tm), lambda n, i: (n, 0, i)),
                # prototypes + their squared norms stay resident across all steps
                pl.BlockSpec((K, C), lambda n, i: (0, 0)),
                pl.BlockSpec((K, 1), lambda n, i: (0, 0)),
            ],
            out_specs=pl.BlockSpec((pl.Squeezed(), K, tm), lambda n, i: (n, 0, i)),
        ),
        compiler_params=pltpu.CompilerParams(
            # Both axes independent -> megacore-shardable on v7x; no-op on v5e/v6e.
            dimension_semantics=("parallel", "parallel"),
            vmem_limit_bytes=vmem_limit_bytes,
        ),
    )(feat_p, proto, p2)

    out = out_full[:, :, :HW] if HW_pad != HW else out_full
    # (N, K, HW) -> (N, K, H, W): free reshape, no transpose.
    return out.reshape(N, K, H, W)


def _reference(feat, objective_vectors, class_numbers):
    # Pure-JAX reference mirroring the PyTorch loop.
    protos = objective_vectors[0, :class_numbers, :]                    # (K, C)
    diff = protos[None, :, :, None, None] - feat[:, None, :, :, :]      # (N, K, C, H, W)
    return jnp.sqrt(jnp.sum(diff * diff, axis=2))                       # (N, K, H, W)


if __name__ == "__main__":
    key = jax.random.PRNGKey(0)
    k1, k2 = jax.random.split(key)

    N, C, H, W = 2, 4, 16, 16
    class_numbers = 8

    feat = jax.random.normal(k1, (N, C, H, W), dtype=jnp.float32)
    objective_vectors = jax.random.normal(k2, (1, class_numbers, C), dtype=jnp.float32)

    out = feat_prototype_distance(feat, objective_vectors, class_numbers)
    out = jax.block_until_ready(out)

    ref = _reference(feat, objective_vectors, class_numbers)
    assert out.shape == (N, class_numbers, H, W)
    assert jnp.allclose(out, ref, atol=1e-4, rtol=1e-4), "mismatch vs reference"

    print("KERNEL_OK")
</pallas_src>

<mosaic_0001>
module attributes {stable_mosaic.version = 11 : i64} {
  func.func @_proto_dist_kernel(%arg0: i32, %arg1: i32, %arg2: memref<1x4x256xf32, #tpu.memory_space<vmem>>, %arg3: memref<8x4xf32, #tpu.memory_space<vmem>>, %arg4: memref<8x1xf32, #tpu.memory_space<vmem>>, %arg5: memref<1x8x256xf32, #tpu.memory_space<vmem>>) attributes {dimension_semantics = [#tpu.dimension_semantics<parallel>, #tpu.dimension_semantics<parallel>], iteration_bounds = array<i64: 2, 1>, scalar_prefetch = 0 : i64, scratch_operands = 0 : i64, tpu.core_type = #tpu.core_type<tc>, window_params = [{transform_indices = @transform_0, window_bounds = array<i64: 1, 4, 256>}, {pipeline_mode = #tpu.pipeline_mode<synchronous>, transform_indices = @transform_1, window_bounds = array<i64: 8, 4>}, {pipeline_mode = #tpu.pipeline_mode<synchronous>, transform_indices = @transform_2, window_bounds = array<i64: 8, 1>}, {transform_indices = @transform_3, window_bounds = array<i64: 1, 8, 256>}]} {
    %c0 = arith.constant 0 : index
    %c0_0 = arith.constant 0 : index
    %c0_1 = arith.constant 0 : index
    %0 = vector.load %arg2[%c0, %c0_0, %c0_1] : memref<1x4x256xf32, #tpu.memory_space<vmem>>, vector<1x4x256xf32>
    %1 = vector.shape_cast %0 : vector<1x4x256xf32> to vector<4x256xf32>
    %c0_2 = arith.constant 0 : index
    %c0_3 = arith.constant 0 : index
    %2 = vector.load %arg3[%c0_2, %c0_3] : memref<8x4xf32, #tpu.memory_space<vmem>>, vector<8x4xf32>
    %cst = arith.constant dense<0.000000e+00> : vector<8x256xf32>
    %3 = tpu.matmul %2, %1, %cst {dimension_numbers = #tpu.dot_dimension_numbers<[1], [0], [0], [1], [0, 0, 1, 1], [], []>} : vector<8x4xf32>, vector<4x256xf32>, vector<8x256xf32> -> vector<8x256xf32>
    %4 = arith.mulf %1, %1 : vector<4x256xf32>
    %cst_4 = arith.constant dense<0.000000e+00> : vector<256xf32>
    %5 = vector.multi_reduction <add>, %4, %cst_4 [0] : vector<4x256xf32> to vector<256xf32>
    %6 = vector.shape_cast %5 : vector<256xf32> to vector<1x256xf32>
    %c0_5 = arith.constant 0 : index
    %c0_6 = arith.constant 0 : index
    %7 = vector.load %arg4[%c0_5, %c0_6] : memref<8x1xf32, #tpu.memory_space<vmem>>, vector<8x1xf32>
    %8 = vector.broadcast %7 : vector<8x1xf32> to vector<8x256xf32>
    %9 = vector.broadcast %6 : vector<1x256xf32> to vector<8x256xf32>
    %10 = arith.addf %8, %9 : vector<8x256xf32>
    %cst_7 = arith.constant 2.000000e+00 : f32
    %11 = vector.broadcast %cst_7 : f32 to vector<8x256xf32>
    %12 = arith.mulf %11, %3 : vector<8x256xf32>
    %13 = arith.subf %10, %12 : vector<8x256xf32>
    %cst_8 = arith.constant 0.000000e+00 : f32
    %14 = vector.broadcast %cst_8 : f32 to vector<8x256xf32>
    %15 = arith.maximumf %13, %14 : vector<8x256xf32>
    %16 = math.sqrt %15 : vector<8x256xf32>
    %c0_9 = arith.constant 0 : index
    %c0_10 = arith.constant 0 : index
    %c0_11 = arith.constant 0 : index
    %17 = vector.load %arg5[%c0_9, %c0_10, %c0_11] : memref<1x8x256xf32, #tpu.memory_space<vmem>>, vector<1x8x256xf32>
    %18 = vector.shape_cast %17 : vector<1x8x256xf32> to vector<8x256xf32>
    %19 = vector.shape_cast %16 : vector<8x256xf32> to vector<1x8x256xf32>
    tpu.vector_store %arg5[%c0_9, %c0_10, %c0_11], %19 {strides = array<i32>} : memref<1x8x256xf32, #tpu.memory_space<vmem>>, vector<1x8x256xf32>,
    return
  }
  func.func @transform_0(%arg0: i32, %arg1: i32) -> (i32, i32, i32) {
    %c0_i32 = arith.constant 0 : i32
    %c0_i32_0 = arith.constant 0 : i32
    return %arg0, %c0_i32, %arg1 : i32, i32, i32
  }
  func.func @transform_1(%arg0: i32, %arg1: i32) -> (i32, i32) {
    %c0_i32 = arith.constant 0 : i32
    %c0_i32_0 = arith.constant 0 : i32
    %c0_i32_1 = arith.constant 0 : i32
    return %c0_i32, %c0_i32_0 : i32, i32
  }
  func.func @transform_2(%arg0: i32, %arg1: i32) -> (i32, i32) {
    %c0_i32 = arith.constant 0 : i32
    %c0_i32_0 = arith.constant 0 : i32
    %c0_i32_1 = arith.constant 0 : i32
    return %c0_i32, %c0_i32_0 : i32, i32
  }
  func.func @transform_3(%arg0: i32, %arg1: i32) -> (i32, i32, i32) {
    %c0_i32 = arith.constant 0 : i32
    %c0_i32_0 = arith.constant 0 : i32
    return %arg0, %c0_i32, %arg1 : i32, i32, i32
  }
}

</mosaic_0001>

<llo_original>
// kernel: tpu_custom_call.1
$region0: #{tpu_custom_call.1}
  #allocation0 [shape = 'u32[]', space=smem, size = 0x4, offset = 0x4, fixed_abs, tag = 'smem constant byte address 0x4 - core index']
  #allocation1 [shape = 'u32[72,128]{1,0:T(1,128)}', space=vmem, size = 0x9000, scoped, tag = 'internal scratch']
  %s0 = inlined_call_operand.vmem [shape: f32[2,4,256], index: 0, kind: input, shape index: {}]
  %s1 = inlined_call_operand.vmem [shape: f32[8,4], index: 1, kind: input, shape index: {}]
  %s2 = inlined_call_operand.vmem [shape: f32[8,1], index: 2, kind: input, shape index: {}]
  %s3 = inlined_call_operand.hbm [shape: f32[2,8,256], index: 3, kind: output, shape index: {}]
  %s4 = sld [smem:[#allocation0]]
  $region45: #{tpu_custom_call.1} parent=0
    _
  %s6 = ssub.s32 1, %s4
  %s7 = scalar_select 0, %s6, %s4
  $region1: #{tpu_custom_call.1} parent=0
    #allocation2 [shape = 'u8[16384]{0}', space=vmem, size = 0x4000, scoped, tag = 'output window, operand 0']
    #allocation3 [shape = 's32[2]{0}', space=sflag, size = 0x8, scoped, tag = 'scoped memory for tpu_custom_call.1']
    %8 = vsyncpa [#allocation3], 0
    %s9 = scalar_lea.sflag [#allocation3], 1
    %10 = vsyncpa %s9, 0
    loop: start=0, step=1, limit=4
    $region2: #{tpu_custom_call.1} parent=1 // loop_pre_header
      _
    $region3: #{tpu_custom_call.1} parent=1 // loop_header
      %s12 = sphi 0, %s16
      %p13 = scmp.ge.s32.totalorder %s12, 4
      %s19 = sphi 0, %s31
      %s20 = sphi 0, %s27
      %s21 = sphi 0, %s19
      %s22 = sphi 0, %s20
      %s23 = sphi 0, %s21
      %s24 = sphi 0, %s22
      %s36 = sphi 0, %s38
      %s39 = sphi 0, %s36
      %s40 = sphi 0, %s39
      %s56 = sphi 0, %s40
      %s60 = sphi 0, %s60
      %s62 = sphi 0, %s60
      %s63 = sphi 0, %s62
      %s77 = sphi 0, %s63
      %s81 = sphi 0, %s81
      %s83 = sphi 0, %s81
      %s84 = sphi 0, %s83
      %s98 = sphi 0, %s84
      %s106 = sphi 0, %s108
      %s109 = sphi 0, %s106
      %s110 = sphi 0, %s109
      %s126 = sphi 0, %s110
    $region4: #{tpu_custom_call.1} parent=1 // loop_header_branch
      %15 = sbr.rel (%p13) target = $region8
    $region5: #{tpu_custom_call.1} parent=1 // loop_body
      %s17 = ssub.s32 %s12, 1
      %s18 = ssub.s32 %s12, 2
      %s25 = sadd.s32 1, %s20
      %p26 = scmp.ge.s32.totalorder %s25, 1
      %s27 = scalar_select %p26, 0, %s25
      %s28 = sadd.s32 1, %s19
      %s29 = scalar_select %p26, %s28, %s19
      %p30 = scmp.ge.s32.totalorder %s29, 2
      %s31 = scalar_select %p30, 0, %s29
      %s32 = ssub.s32 %s19, %s31
      %s33 = ssub.s32 %s20, %s27
      %s34 = sor.u32 %s32, %s33
      %p35 = scmp.eq.s32.totalorder %s34, 0
      %s37 = sadd.s32 %s36, 1
      %s38 = scalar_select %p35, %s36, %s37
      %p41 = pneg %p35
      %p42 = scmp.eq.s32.totalorder %s12, 1
      %p43 = por %p41, %p42
      %p44 = scmp.ne.s32.totalorder %s36, %s39
      %p45 = scmp.eq.s32.totalorder %s12, 0
      %p46 = por %p44, %p45
      %p47 = scmp.ne.s32.totalorder %s36, %s39
      %p48 = scmp.eq.s32.totalorder %s17, 1
      %p49 = por %p47, %p48
      %p50 = scmp.ne.s32.totalorder %s39, %s40
      %p51 = scmp.eq.s32.totalorder %s17, 0
      %p52 = por %p50, %p51
      %p53 = scmp.ne.s32.totalorder %s39, %s40
      %p54 = scmp.eq.s32.totalorder %s18, 1
      %p55 = por %p53, %p54
      %p57 = scmp.ne.s32.totalorder %s40, %s56
      %p58 = scmp.eq.s32.totalorder %s18, 0
      %p59 = por %p57, %p58
      %s61 = sadd.s32 %s60, 1
      %p64 = scmp.eq.s32.totalorder %s12, 1
      %p65 = scmp.ne.s32.totalorder %s60, %s62
      %p66 = scmp.eq.s32.totalorder %s12, 0
      %p67 = por %p65, %p66
      %p68 = scmp.ne.s32.totalorder %s60, %s62
      %p69 = scmp.eq.s32.totalorder %s17, 1
      %p70 = por %p68, %p69
      %p71 = scmp.ne.s32.totalorder %s62, %s63
      %p72 = scmp.eq.s32.totalorder %s17, 0
      %p73 = por %p71, %p72
      %p74 = scmp.ne.s32.totalorder %s62, %s63
      %p75 = scmp.eq.s32.totalorder %s18, 1
      %p76 = por %p74, %p75
      %p78 = scmp.ne.s32.totalorder %s63, %s77
      %p79 = scmp.eq.s32.totalorder %s18, 0
      %p80 = por %p78, %p79
      %s82 = sadd.s32 %s81, 1
      %p85 = scmp.eq.s32.totalorder %s12, 1
      %p86 = scmp.ne.s32.totalorder %s81, %s83
      %p87 = scmp.eq.s32.totalorder %s12, 0
      %p88 = por %p86, %p87
      %p89 = scmp.ne.s32.totalorder %s81, %s83
      %p90 = scmp.eq.s32.totalorder %s17, 1
      %p91 = por %p89, %p90
      %p92 = scmp.ne.s32.totalorder %s83, %s84
      %p93 = scmp.eq.s32.totalorder %s17, 0
      %p94 = por %p92, %p93
      %p95 = scmp.ne.s32.totalorder %s83, %s84
      %p96 = scmp.eq.s32.totalorder %s18, 1
      %p97 = por %p95, %p96
      %p99 = scmp.ne.s32.totalorder %s84, %s98
      %p100 = scmp.eq.s32.totalorder %s18, 0
      %p101 = por %p99, %p100
      %s102 = ssub.s32 %s19, %s31
      %s103 = ssub.s32 %s20, %s27
      %s104 = sor.u32 %s102, %s103
      %p105 = scmp.eq.s32.totalorder %s104, 0
      %s107 = sadd.s32 %s106, 1
      %s108 = scalar_select %p105, %s106, %s107
      %p111 = pneg %p105
      %p112 = scmp.eq.s32.totalorder %s12, 1
      %p113 = por %p111, %p112
      %p114 = scmp.ne.s32.totalorder %s106, %s109
      %p115 = scmp.eq.s32.totalorder %s12, 0
      %p116 = por %p114, %p115
      %p117 = scmp.ne.s32.totalorder %s106, %s109
      %p118 = scmp.eq.s32.totalorder %s17, 1
      %p119 = por %p117, %p118
      %p120 = scmp.ne.s32.totalorder %s109, %s110
      %p121 = scmp.eq.s32.totalorder %s17, 0
      %p122 = por %p120, %p121
      %p123 = scmp.ne.s32.totalorder %s109, %s110
      %p124 = scmp.eq.s32.totalorder %s18, 1
      %p125 = por %p123, %p124
      %p127 = scmp.ne.s32.totalorder %s110, %s126
      %p128 = scmp.eq.s32.totalorder %s18, 0
      %p129 = por %p127, %p128
      %p130 = scmp.le.s32.totalorder 1, %s12
      %p131 = scmp.lt.s32.totalorder %s12, 3
      %p132 = pnand %p130, %p131
      %p133 = pneg %p132
      // Predicated region
      $region9: #{tpu_custom_call.1} parent=5 // pred_check
        _
      $region10: #{tpu_custom_call.1} parent=5 // pred_check_branch
        %135 = sbr.rel (%p132) target = $region12
      $region11: #{tpu_custom_call.1} parent=5 // pred_region
        %s136 = ssub.s32 %s12, 1
        // Predicated region
        $region13: #{tpu_custom_call.1} parent=11 // pred_check
          %p137 = pneg %p73
        $region14: #{tpu_custom_call.1} parent=11 // pred_check_branch
          %139 = sbr.rel (%p137) target = $region16
        $region15: #{tpu_custom_call.1} parent=11 // pred_region
          _
        $region16: #{tpu_custom_call.1} parent=11 // pred_fallthru
          _
        // Predicated region
        $region17: #{tpu_custom_call.1} parent=11 // pred_check
          %p140 = pneg %p94
        $region18: #{tpu_custom_call.1} parent=11 // pred_check_branch
          %142 = sbr.rel (%p140) target = $region20
        $region19: #{tpu_custom_call.1} parent=11 // pred_region
          _
        $region20: #{tpu_custom_call.1} parent=11 // pred_fallthru
          _
      $region12: #{tpu_custom_call.1} parent=5 // pred_fallthru
        _
      %p143 = scmp.lt.s32.totalorder %s12, 2
      // Predicated region
      $region21: #{tpu_custom_call.1} parent=5 // pred_check
        %p144 = pneg %p143
      $region22: #{tpu_custom_call.1} parent=5 // pred_check_branch
        %146 = sbr.rel (%p144) target = $region24
      $region23: #{tpu_custom_call.1} parent=5 // pred_region
        // Predicated region
        $region25: #{tpu_custom_call.1} parent=23 // pred_check
          %p147 = pneg %p46
        $region26: #{tpu_custom_call.1} parent=23 // pred_check_branch
          %149 = sbr.rel (%p147) target = $region28
        $region27: #{tpu_custom_call.1} parent=23 // pred_region
          %s150 = smul.u32 2, %s20
          %p151 = scmp.lt.s32.totalorder %s19, 1
          %s152 = scalar_select %p151, %s19, 1
          %p153 = scmp.lt.s32.totalorder %s150, 1
          %s154 = scalar_select %p153, %s150, 1
          %s155 = smul.addr %s152, 2
          %s156 = sadd.s32 %s154, %s155
          %s157 = smul.addr %s156, 4
          %s158 = scalar_lea.vmem %s0, %s157
          %s159 = smul.u32 2, %s20
        $region28: #{tpu_custom_call.1} parent=23 // pred_fallthru
          _
      $region24: #{tpu_custom_call.1} parent=5 // pred_fallthru
        _
      %p160 = scmp.le.s32.totalorder 1, %s12
      %p161 = scmp.lt.s32.totalorder %s12, 3
      %p162 = pnand %p160, %p161
      %p163 = pneg %p162
      // Predicated region
      $region29: #{tpu_custom_call.1} parent=5 // pred_check
        _
      $region30: #{tpu_custom_call.1} parent=5 // pred_check_branch
        %165 = sbr.rel (%p162) target = $region32
      $region31: #{tpu_custom_call.1} parent=5 // pred_region
        %s166 = ssub.s32 %s12, 1
        %s167 = smul.u32 2, %s22
        %p168 = scmp.lt.s32.totalorder %s21, 1
        %s169 = scalar_select %p168, %s21, 1
        %p170 = scmp.lt.s32.totalorder %s167, 1
        %s171 = scalar_select %p170, %s167, 1
        %s172 = smul.addr %s169, 2
        %s173 = sadd.s32 %s171, %s172
        %s174 = smul.addr %s173, 4
        %s175 = scalar_lea.vmem %s0, %s174
        %p176 = pneg %p52
        %p177 = pneg %p49
        %p178 = pneg %p73
        %p179 = pneg %p70
        %p180 = pneg %p94
        %p181 = pneg %p91
        %p182 = pneg %p122
        %p183 = pneg %p119
        %s184 = sand.u32 %s109, 1
        %s185 = scalar_lea.sflag [#allocation3], %s184
        %s186 = sand.u32 %s109, 1
        %s187 = smul.addr %s186, 16
        %s188 = scalar_lea.vmem [#allocation2], %s187
        %s189 = smul.u32 2, %s22
        %p190 = scmp.lt.s32.totalorder %s21, 1
        %s191 = scalar_select %p190, %s21, 1
        %p192 = scmp.lt.s32.totalorder %s189, 1
        %s193 = scalar_select %p192, %s189, 1
        %s194 = smul.addr %s191, 2
        %s195 = sadd.s32 %s193, %s194
        %s196 = smul.addr %s195, 4
        %s197 = scalar_lea.vmem %s0, %s196
        %s198 = smul.u32 2, %s22
        %s199 = smul.u32 2, %s22
        %v200 = vld [vmem:[%s197] sm:$0xff]
        %v201 = vld [vmem:[%s1] sm:$0xff]
        %203 = vst [vmem:[#allocation1] ss:$2 sm:$0xff] %v200
        %v204 = vld.sshfl [vmem:[#allocation1] sm:$0xff pattern:$0x75316420]
        %v205 = vld.sshfl [vmem:[#allocation1 + $0x8] sm:$0xff pattern:$0x75316420]
        %vm206 = vcmask 31744
        %v208 = vsel %vm206, %v201, 0
        %vm210 = vcmask 1043456
        %v211 = vsel %vm210, %v204, 0
        %v213 = vsel %vm210, %v205, 0
        %215 = vmatpush.msra.mxu0 0.0
        %216 = vmatpush.msra.mxu0 0.0
        %217 = vmatpush.msra.mxu0 0.0
        %218 = vmatpush.msra.mxu0 0.0
        %219 = vmatpush.msra.mxu0 0.0
        %220 = vmatpush.msra.mxu0 0.0
        %221 = vmatpush.msra.mxu0 0.0
        %222 = vmatpush.msra.mxu0 0.0
        %223 = vmatpush.msra.mxu0 0.0
        %224 = vmatpush.msra.mxu0 0.0
        %225 = vmatpush.msra.mxu0 0.0
        %226 = vmatpush.msra.mxu0 0.0
        %227 = vmatpush.msra.mxu0 0.0
        %228 = vmatpush.msra.mxu0 0.0
        %229 = vmatpush.msra.mxu0 0.0
        %230 = vmatpush.msra.mxu0 %v211
        %231 = vmatmul.f32.gmra.mxu0 %v208
        %v232 = vpop.f32.mrf.mxu0
        %v233 = vadd.f32 0.0, %v232
        %234 = vdwg.mxu0
        %235 = vmatpush.msra.mxu0 0.0
        %236 = vmatpush.msra.mxu0 0.0
        %237 = vmatpush.msra.mxu0 0.0
        %238 = vmatpush.msra.mxu0 0.0
        %239 = vmatpush.msra.mxu0 0.0
        %240 = vmatpush.msra.mxu0 0.0
        %241 = vmatpush.msra.mxu0 0.0
        %242 = vmatpush.msra.mxu0 0.0
        %243 = vmatpush.msra.mxu0 0.0
        %244 = vmatpush.msra.mxu0 0.0
        %245 = vmatpush.msra.mxu0 0.0
        %246 = vmatpush.msra.mxu0 0.0
        %247 = vmatpush.msra.mxu0 0.0
        %248 = vmatpush.msra.mxu0 0.0
        %249 = vmatpush.msra.mxu0 0.0
        %250 = vmatpush.msra.mxu0 %v213
        %251 = vmatmul.f32.gmra.mxu0 %v208
        %v252 = vpop.f32.mrf.mxu0
        %v253 = vadd.f32 0.0, %v252
        %254 = vdwg.mxu0
        %v255 = vmul.f32 %v200, %v200
        %257 = vst [vmem:[#allocation1] ss:$2 sm:$0xff] %v255
        %v258 = vld.sshfl [vmem:[#allocation1] sm:$0xff pattern:$0x75316420]
        %v259 = vld.sshfl [vmem:[#allocation1 + $0x8] sm:$0xff pattern:$0x75316420]
        %v262 = vsel %vm210, %v258, 0.0
        %v263 = vrot.slane %v262, 4
        %v264 = vadd.f32 %v262, %v263
        %v265 = vrot.slane %v264, 2
        %v266 = vadd.f32 %v264, %v265
        %v267 = vrot.slane %v266, 1
        %v268 = vadd.f32 %v266, %v267
        %v269 = vsel %vm210, %v259, 0.0
        %v270 = vrot.slane %v269, 4
        %v271 = vadd.f32 %v269, %v270
        %v272 = vrot.slane %v271, 2
        %v273 = vadd.f32 %v271, %v272
        %v274 = vrot.slane %v273, 1
        %v275 = vadd.f32 %v273, %v274
        %v276 = vld [vmem:[%s2] sm:$0xff]
        %278 = vset.pattern.permute.xlu0 0
        %279 = vperm.xlu0 %278, %v276
        %v280 = vpop.permute.xlu0 %279
        %v282 = vadd.f32 %v280, %v268
        %v283 = vadd.f32 %v280, %v275
        %v284 = vmul.f32 %v233, 2.0
        %v285 = vmul.f32 %v253, 2.0
        %v286 = vsub.f32 %v282, %v284
        %v287 = vsub.f32 %v283, %v285
        %v288 = vmax.f32 %v286, 0.0
        %v289 = vmax.f32 %v287, 0.0
        %v290 = vrsqrt.pop %v288
        %v291 = vmul.f32 %v290, %v288
        %v292 = vmul.f32 %v291, %v290
        %v293 = vmul.f32 0.5, %v292
        %v294 = vsub.f32 1.5, %v293
        %v295 = vmul.f32 %v290, %v294
        %v296 = vmul.f32 %v288, %v295
        %vm297 = vcmp.eq.f32.partialorder %v288, inf
        %v298 = vsel %vm297, %v288, %v296
        %vm299 = vcmp.eq.f32.partialorder %v288, 0.0
        %v300 = vand.u32 %v288, 2147483648
        %v301 = vsel %vm299, %v300, %v298
        %v302 = vrsqrt.pop %v289
        %v303 = vmul.f32 %v302, %v289
        %v304 = vmul.f32 %v303, %v302
        %v305 = vmul.f32 0.5, %v304
        %v306 = vsub.f32 1.5, %v305
        %v307 = vmul.f32 %v302, %v306
        %v308 = vmul.f32 %v289, %v307
        %vm309 = vcmp.eq.f32.partialorder %v289, inf
        %v310 = vsel %vm309, %v289, %v308
        %vm311 = vcmp.eq.f32.partialorder %v289, 0.0
        %v312 = vand.u32 %v289, 2147483648
        %v313 = vsel %vm311, %v312, %v310
        %314 = vst [vmem:[%s188] sm:$0xff] %v301
        %315 = vst [vmem:[%s188 + $0x8] sm:$0xff] %v313
        %s316 = sand.u32 %s109, 1
        %s317 = scalar_lea.sflag [#allocation3], %s316
        %s318 = sand.u32 %s109, 1
        %s319 = smul.addr %s318, 16
        %s320 = scalar_lea.vmem [#allocation2], %s319
        // Predicated region
        $region33: #{tpu_custom_call.1} parent=31 // pred_check
          %p321 = pneg %p119
        $region34: #{tpu_custom_call.1} parent=31 // pred_check_branch
          %323 = sbr.rel (%p321) target = $region36
        $region35: #{tpu_custom_call.1} parent=31 // pred_region
          %s324 = smul.u32 2, %s22
          %326 = vsyncadd %s317, 0
          %s327 = smul.addr %s21, 2
          %s328 = sadd.s32 %s324, %s327
          %s329 = smul.addr %s328, 8
          %s330 = scalar_lea.hbm %s3, %s329
          %s332 = sshll.u32 %s320, 4
          %s333 = int_to_ptr.vmem [resolvable:$true] %s332
          %s334 = sshll.u32 %s330, 4
          %s335 = int_to_ptr.hbm [resolvable:$true] %s334
          %337 = dma.vmem_to_hbm [thread:$0]  %s333, 256, %s335, %s317
        $region36: #{tpu_custom_call.1} parent=31 // pred_fallthru
          _
      $region32: #{tpu_custom_call.1} parent=5 // pred_fallthru
        _
      %p338 = scmp.le.s32.totalorder 2, %s12
      // Predicated region
      $region37: #{tpu_custom_call.1} parent=5 // pred_check
        %p339 = pneg %p338
      $region38: #{tpu_custom_call.1} parent=5 // pred_check_branch
        %341 = sbr.rel (%p339) target = $region40
      $region39: #{tpu_custom_call.1} parent=5 // pred_region
        %s342 = ssub.s32 %s12, 2
        // Predicated region
        $region41: #{tpu_custom_call.1} parent=39 // pred_check
          %p343 = pneg %p125
        $region42: #{tpu_custom_call.1} parent=39 // pred_check_branch
          %345 = sbr.rel (%p343) target = $region44
        $region43: #{tpu_custom_call.1} parent=39 // pred_region
          %s346 = sand.u32 %s110, 1
          %s347 = scalar_lea.sflag [#allocation3], %s346
          %s348 = sand.u32 %s110, 1
          %s349 = smul.addr %s348, 16
          %s350 = scalar_lea.vmem [#allocation2], %s349
          %352 = dma.done %s347, 256
        $region44: #{tpu_custom_call.1} parent=39 // pred_fallthru
          _
      $region40: #{tpu_custom_call.1} parent=5 // pred_fallthru
        _
    $region6: #{tpu_custom_call.1} parent=1 // loop_footer
      %s16 = sadd.s32 1, %s12
    $region7: #{tpu_custom_call.1} parent=1 // loop_footer_branch
      %11 = sbr.rel target = $region3
    $region8: #{tpu_custom_call.1} parent=1 // loop_exit
      _
    %353 = vsyncpa [#allocation3], 1
    %s354 = scalar_lea.sflag [#allocation3], 1
    %355 = vsyncpa %s354, 1

</llo_original>
